<compile_context>
chip_gen: v7x
topology: tpu7x:2x2x1
jax: 0.10.0
libtpu: 0.0.40
codegen_flags: <defaults>
</compile_context>

<pallas_src>
import numpy as np
import jax
import jax.numpy as jnp
from jax.experimental import pallas as pl
from jax.experimental.pallas import tpu as pltpu


# ----------------------------------------------------------------------------
# Fused kernel factory: 3 x (gconv -> BN -> ReLU -> [pool folded]) -> pool2 -> fc
# ----------------------------------------------------------------------------
def make_spgcn_kernel(adj_shapes, hid_dim):
    """adj_shapes: (rows, cols) of each matrix packed in the adjacency slab:
       [A0 (J0,J0), adj1@pool0 (J1,J0), adj2@pool1 (J2,J1), pool2 (1,J2)]."""

    def kernel(x_ref, adj_ref, w_ref, wfc_ref, out_ref):
        f32, bf16 = jnp.float32, jnp.bfloat16
        B = x_ref.shape[0]

        def bcast(m):
            # Shared per-graph / per-layer matrix -> batched operand so every
            # contraction is a canonical batched matmul (no block-diagonal).
            return jnp.broadcast_to(m, (B,) + m.shape)

        def bn_relu(h):
            # nn.BatchNorm1d, training mode: per-channel stats over all (B, J)
            # rows, biased variance, eps=1e-5; gamma=1 / beta=0 baked out.
            # One-pass variance: var = E[h^2] - E[h]^2.
            inv_n = 1.0 / float(h.shape[0] * h.shape[1])
            s1 = jnp.sum(jnp.sum(h, axis=1, keepdims=True), axis=0, keepdims=True)
            s2 = jnp.sum(jnp.sum(h * h, axis=1, keepdims=True), axis=0, keepdims=True)
            mean = s1 * inv_n
            var = s2 * inv_n - mean * mean
            inv_std = jax.lax.rsqrt(var + 1e-5)
            return jnp.maximum((h - mean) * inv_std, 0.0)          # BN + ReLU

        # Three fused _GraphConv blocks.  The previous layer's mean-pool is
        # pre-folded into this layer's adjacency (AP = adj @ pool), so each
        # block is exactly two bf16 MXU matmuls with f32 accumulation.
        a = x_ref[...]                                             # (B, J0, hid) f32
        for l in range(3):
            r, c = adj_shapes[l]
            adj = adj_ref[l, 0:r, 0:c]                             # (J_l, J_{l-1}) bf16
            xw = jnp.einsum('bjc,bcd->bjd', a.astype(bf16), bcast(w_ref[l]),
                            preferred_element_type=f32)            # a @ W
            h = jnp.einsum('bij,bjd->bid', bcast(adj), xw.astype(bf16),
                           preferred_element_type=f32)             # AP @ (a @ W)
            a = bn_relu(h)

        # Final mean-pool (P2) and fc = Linear(hid, out); the fc bias is packed
        # as the last row of the fc slab.  Output stays (B, 1, 128): lane-dense.
        r, c = adj_shapes[3]
        pooled = jnp.einsum('bij,bjd->bid', bcast(adj_ref[3, 0:r, 0:c]),
                            a.astype(bf16), preferred_element_type=f32)
        w_fc = wfc_ref[0:hid_dim, :]                               # (hid, 128) bf16
        b_fc = wfc_ref[hid_dim:hid_dim + 1, :].astype(f32)         # (1, 128)
        out_ref[...] = jnp.einsum('bij,bjd->bid', pooled.astype(bf16),
                                  bcast(w_fc), preferred_element_type=f32) + b_fc

    return kernel


# ----------------------------------------------------------------------------
# Wrapper
# ----------------------------------------------------------------------------
def spgcn_forward(x, params):
    """Full SPGCN forward. x: (B, J0, in_dim) float32 -> (B, out_dim)."""
    B, J0, Cin = x.shape
    hid = params["hid_dim"]
    out_dim = params["out_dim"]
    out_pad = params["wfc_slab"].shape[1]

    # Zero-pad input channels to hid (W0's input rows are zero-padded to match)
    # so W0/W1/W2 live in a single (3, hid, hid) weight slab.
    x_pad = jnp.pad(x, ((0, 0), (0, 0), (0, hid - Cin)))

    kernel = make_spgcn_kernel(params["adj_shapes"], hid)
    vmem = pl.BlockSpec(memory_space=pltpu.MemorySpace.VMEM)

    out = pl.pallas_call(
        kernel,
        out_shape=jax.ShapeDtypeStruct((B, 1, out_pad), jnp.float32),
        in_specs=[vmem] * 4,
        out_specs=vmem,
    )(x_pad, params["adj_slab"], params["w_slab"], params["wfc_slab"])

    # fc(c2_d).squeeze(1), then drop the lane padding.
    return out[:, 0, :out_dim]


# ----------------------------------------------------------------------------
# Deterministic parameter / structure construction (host-side, NumPy)
# ----------------------------------------------------------------------------
def build_ring_adj(n):
    """Ring graph + self loops, row-normalized."""
    a = np.eye(n, dtype=np.float32)
    idx = np.arange(n)
    a[idx, (idx + 1) % n] = 1.0
    a[idx, (idx - 1) % n] = 1.0
    return a / a.sum(axis=1, keepdims=True)


def build_pool_mat(node_map, n_nodes):
    """Row-normalized pooling matrix (mean over each node group)."""
    mat = np.zeros((len(node_map), n_nodes), dtype=np.float32)
    for i, group in enumerate(node_map):
        mat[i, list(group)] = 1.0 / len(group)
    return mat


def init_params(key, in_dim, hid_dim, out_dim, node_maps, n_nodes, out_pad=128):
    # fc = Linear(hid, out) consumes the out_dim-wide features of gconv2, so
    # the reference module only makes sense with out_dim == hid_dim.
    assert hid_dim == out_dim, "SPGCN requires out_dim == hid_dim"
    ks = jax.random.split(key, 5)
    scale = 0.1

    def dense(k, ci, co):
        return scale * jax.random.normal(k, (ci, co), dtype=jnp.float32)

    # Graph structure.
    adj0 = build_ring_adj(n_nodes[0])
    adj1 = build_ring_adj(n_nodes[1])
    adj2 = build_ring_adj(n_nodes[2])
    pool0 = build_pool_mat(node_maps[0], n_nodes[0])
    pool1 = build_pool_mat(node_maps[1], n_nodes[1])
    pool2 = build_pool_mat(node_maps[2], n_nodes[2])

    # Fold pool(L) into adj(L+1): layer L+1 computes (adj @ pool) @ (a_L @ W).
    ap1 = adj1 @ pool0                                  # (J1, J0)
    ap2 = adj2 @ pool1                                  # (J2, J1)

    mats = [adj0, ap1, ap2, pool2]
    adj_shapes = [m.shape for m in mats]
    slab_r = max(r for r, _ in adj_shapes)
    slab_c = max(c for _, c in adj_shapes)
    adj_slab = np.zeros((len(mats), slab_r, slab_c), dtype=np.float32)
    for i, m in enumerate(mats):
        adj_slab[i, :m.shape[0], :m.shape[1]] = m

    # Layer weights; W0's input dim zero-padded to hid so all three share one slab.
    # (Per-channel gconv biases are omitted — cancelled by training-mode BN.)
    w0 = dense(ks[0], in_dim, hid_dim)
    w1 = dense(ks[1], hid_dim, hid_dim)
    w2 = dense(ks[2], hid_dim, out_dim)
    w_slab = jnp.zeros((3, hid_dim, hid_dim), jnp.float32)
    w_slab = w_slab.at[0, :in_dim, :].set(w0)
    w_slab = w_slab.at[1].set(w1)
    w_slab = w_slab.at[2].set(w2)

    # fc: Linear(hid, out), padded to out_pad lanes; bias packed as an extra row.
    w_fc = dense(ks[3], hid_dim, out_dim)
    b_fc = scale * jax.random.normal(ks[4], (out_dim,), dtype=jnp.float32)
    wfc_slab = jnp.zeros((hid_dim + 1, out_pad), jnp.float32)
    wfc_slab = wfc_slab.at[:hid_dim, :out_dim].set(w_fc)
    wfc_slab = wfc_slab.at[hid_dim, :out_dim].set(b_fc)

    return {
        # bf16 operands -> one MXU pass per dot; accumulation stays f32 in-kernel.
        "adj_slab": jnp.asarray(adj_slab).astype(jnp.bfloat16),
        "adj_shapes": adj_shapes,
        "w_slab": w_slab.astype(jnp.bfloat16),
        "wfc_slab": wfc_slab.astype(jnp.bfloat16),
        "hid_dim": hid_dim,
        "out_dim": out_dim,
    }


# ----------------------------------------------------------------------------
if __name__ == "__main__":
    B, J0 = 2, 16
    in_dim, hid_dim, out_dim = 4, 32, 32

    # hierarchical node maps: 16 -> 8 -> 4 -> 1
    node_maps = [
        [[2 * i, 2 * i + 1] for i in range(8)],   # 16 nodes -> 8
        [[2 * i, 2 * i + 1] for i in range(4)],   # 8 nodes  -> 4
        [[0, 1, 2, 3]],                           # 4 nodes  -> 1
    ]
    n_nodes = [16, 8, 4]

    key = jax.random.PRNGKey(0)
    k_x, k_p = jax.random.split(key)
    x = jax.random.normal(k_x, (B, J0, in_dim), dtype=jnp.float32)
    params = init_params(k_p, in_dim, hid_dim, out_dim, node_maps, n_nodes)

    out = spgcn_forward(x, params)
    out = jax.block_until_ready(out)
    assert out.shape == (B, out_dim), out.shape
    assert jnp.all(jnp.isfinite(out))
    print("KERNEL_OK")
</pallas_src>

<mosaic_0001>
module attributes {stable_mosaic.version = 11 : i64} {
  func.func @kernel(%arg0: memref<2x16x32xf32, #tpu.memory_space<vmem>>, %arg1: memref<4x16x16xbf16, #tpu.memory_space<vmem>>, %arg2: memref<3x32x32xbf16, #tpu.memory_space<vmem>>, %arg3: memref<33x128xbf16, #tpu.memory_space<vmem>>, %arg4: memref<2x1x128xf32, #tpu.memory_space<vmem>>) attributes {dimension_semantics = [], scalar_prefetch = 0 : i64, scratch_operands = 0 : i64, tpu.core_type = #tpu.core_type<tc>} {
    %c0 = arith.constant 0 : index
    %c0_0 = arith.constant 0 : index
    %c0_1 = arith.constant 0 : index
    %0 = vector.load %arg0[%c0, %c0_0, %c0_1] : memref<2x16x32xf32, #tpu.memory_space<vmem>>, vector<2x16x32xf32>
    %c0_2 = arith.constant 0 : index
    %c0_3 = arith.constant 0 : index
    %c0_4 = arith.constant 0 : index
    %1 = vector.load %arg1[%c0_2, %c0_3, %c0_4] : memref<4x16x16xbf16, #tpu.memory_space<vmem>>, vector<1x16x16xbf16>
    %2 = vector.shape_cast %1 : vector<1x16x16xbf16> to vector<16x16xbf16>
    %3 = arith.truncf %0 : vector<2x16x32xf32> to vector<2x16x32xbf16>
    %c0_5 = arith.constant 0 : index
    %c0_6 = arith.constant 0 : index
    %c0_7 = arith.constant 0 : index
    %4 = vector.load %arg2[%c0_5, %c0_6, %c0_7] : memref<3x32x32xbf16, #tpu.memory_space<vmem>>, vector<1x32x32xbf16>
    %5 = vector.shape_cast %4 : vector<1x32x32xbf16> to vector<32x32xbf16>
    %6 = vector.shape_cast %5 : vector<32x32xbf16> to vector<1x32x32xbf16>
    %7 = vector.broadcast %6 : vector<1x32x32xbf16> to vector<2x32x32xbf16>
    "tpu.trace_start"() <{level = 10 : i32, message = "bjc,bcd->bjd"}> : () -> ()
    %cst = arith.constant dense<0.000000e+00> : vector<2x16x32xf32>
    %8 = tpu.matmul %3, %7, %cst {dimension_numbers = #tpu.dot_dimension_numbers<[2], [1], [1], [2], [0, 0, 0, 1, 1, 2], [0], [0]>} : vector<2x16x32xbf16>, vector<2x32x32xbf16>, vector<2x16x32xf32> -> vector<2x16x32xf32>
    "tpu.trace_stop"() : () -> ()
    %9 = vector.shape_cast %2 : vector<16x16xbf16> to vector<1x16x16xbf16>
    %10 = vector.broadcast %9 : vector<1x16x16xbf16> to vector<2x16x16xbf16>
    %11 = arith.truncf %8 : vector<2x16x32xf32> to vector<2x16x32xbf16>
    "tpu.trace_start"() <{level = 10 : i32, message = "bij,bjd->bid"}> : () -> ()
    %cst_8 = arith.constant dense<0.000000e+00> : vector<2x16x32xf32>
    %12 = tpu.matmul %10, %11, %cst_8 {dimension_numbers = #tpu.dot_dimension_numbers<[2], [1], [1], [2], [0, 0, 0, 1, 1, 2], [0], [0]>} : vector<2x16x16xbf16>, vector<2x16x32xbf16>, vector<2x16x32xf32> -> vector<2x16x32xf32>
    "tpu.trace_stop"() : () -> ()
    %cst_9 = arith.constant dense<0.000000e+00> : vector<2x32xf32>
    %13 = vector.multi_reduction <add>, %12, %cst_9 [1] : vector<2x16x32xf32> to vector<2x32xf32>
    %14 = vector.shape_cast %13 : vector<2x32xf32> to vector<2x1x32xf32>
    %cst_10 = arith.constant dense<0.000000e+00> : vector<1x32xf32>
    %15 = vector.multi_reduction <add>, %14, %cst_10 [0] : vector<2x1x32xf32> to vector<1x32xf32>
    %16 = vector.shape_cast %15 : vector<1x32xf32> to vector<1x1x32xf32>
    %17 = arith.mulf %12, %12 : vector<2x16x32xf32>
    %cst_11 = arith.constant dense<0.000000e+00> : vector<2x32xf32>
    %18 = vector.multi_reduction <add>, %17, %cst_11 [1] : vector<2x16x32xf32> to vector<2x32xf32>
    %19 = vector.shape_cast %18 : vector<2x32xf32> to vector<2x1x32xf32>
    %cst_12 = arith.constant dense<0.000000e+00> : vector<1x32xf32>
    %20 = vector.multi_reduction <add>, %19, %cst_12 [0] : vector<2x1x32xf32> to vector<1x32xf32>
    %21 = vector.shape_cast %20 : vector<1x32xf32> to vector<1x1x32xf32>
    %cst_13 = arith.constant 3.125000e-02 : f32
    %22 = vector.broadcast %cst_13 : f32 to vector<1x1x32xf32>
    %23 = arith.mulf %16, %22 : vector<1x1x32xf32>
    %cst_14 = arith.constant 3.125000e-02 : f32
    %24 = vector.broadcast %cst_14 : f32 to vector<1x1x32xf32>
    %25 = arith.mulf %21, %24 : vector<1x1x32xf32>
    %26 = arith.mulf %23, %23 : vector<1x1x32xf32>
    %27 = arith.subf %25, %26 : vector<1x1x32xf32>
    %cst_15 = arith.constant 9.99999974E-6 : f32
    %28 = vector.broadcast %cst_15 : f32 to vector<1x1x32xf32>
    %29 = arith.addf %27, %28 : vector<1x1x32xf32>
    %30 = math.rsqrt %29 : vector<1x1x32xf32>
    %31 = vector.broadcast %23 : vector<1x1x32xf32> to vector<2x16x32xf32>
    %32 = arith.subf %12, %31 : vector<2x16x32xf32>
    %33 = vector.broadcast %30 : vector<1x1x32xf32> to vector<2x16x32xf32>
    %34 = arith.mulf %32, %33 : vector<2x16x32xf32>
    %cst_16 = arith.constant 0.000000e+00 : f32
    %35 = vector.broadcast %cst_16 : f32 to vector<2x16x32xf32>
    %36 = arith.maximumf %34, %35 : vector<2x16x32xf32>
    %c1 = arith.constant 1 : index
    %c0_17 = arith.constant 0 : index
    %c0_18 = arith.constant 0 : index
    %37 = vector.load %arg1[%c1, %c0_17, %c0_18] : memref<4x16x16xbf16, #tpu.memory_space<vmem>>, vector<1x8x16xbf16>
    %38 = vector.shape_cast %37 : vector<1x8x16xbf16> to vector<8x16xbf16>
    %39 = arith.truncf %36 : vector<2x16x32xf32> to vector<2x16x32xbf16>
    %c1_19 = arith.constant 1 : index
    %c0_20 = arith.constant 0 : index
    %c0_21 = arith.constant 0 : index
    %40 = vector.load %arg2[%c1_19, %c0_20, %c0_21] : memref<3x32x32xbf16, #tpu.memory_space<vmem>>, vector<1x32x32xbf16>
    %41 = vector.shape_cast %40 : vector<1x32x32xbf16> to vector<32x32xbf16>
    %42 = vector.shape_cast %41 : vector<32x32xbf16> to vector<1x32x32xbf16>
    %43 = vector.broadcast %42 : vector<1x32x32xbf16> to vector<2x32x32xbf16>
    "tpu.trace_start"() <{level = 10 : i32, message = "bjc,bcd->bjd"}> : () -> ()
    %cst_22 = arith.constant dense<0.000000e+00> : vector<2x16x32xf32>
    %44 = tpu.matmul %39, %43, %cst_22 {dimension_numbers = #tpu.dot_dimension_numbers<[2], [1], [1], [2], [0, 0, 0, 1, 1, 2], [0], [0]>} : vector<2x16x32xbf16>, vector<2x32x32xbf16>, vector<2x16x32xf32> -> vector<2x16x32xf32>
    "tpu.trace_stop"() : () -> ()
    %45 = vector.shape_cast %38 : vector<8x16xbf16> to vector<1x8x16xbf16>
    %46 = vector.broadcast %45 : vector<1x8x16xbf16> to vector<2x8x16xbf16>
    %47 = arith.truncf %44 : vector<2x16x32xf32> to vector<2x16x32xbf16>
    "tpu.trace_start"() <{level = 10 : i32, message = "bij,bjd->bid"}> : () -> ()
    %cst_23 = arith.constant dense<0.000000e+00> : vector<2x8x32xf32>
    %48 = tpu.matmul %46, %47, %cst_23 {dimension_numbers = #tpu.dot_dimension_numbers<[2], [1], [1], [2], [0, 0, 0, 1, 1, 2], [0], [0]>} : vector<2x8x16xbf16>, vector<2x16x32xbf16>, vector<2x8x32xf32> -> vector<2x8x32xf32>
    "tpu.trace_stop"() : () -> ()
    %cst_24 = arith.constant dense<0.000000e+00> : vector<2x32xf32>
    %49 = vector.multi_reduction <add>, %48, %cst_24 [1] : vector<2x8x32xf32> to vector<2x32xf32>
    %50 = vector.shape_cast %49 : vector<2x32xf32> to vector<2x1x32xf32>
    %cst_25 = arith.constant dense<0.000000e+00> : vector<1x32xf32>
    %51 = vector.multi_reduction <add>, %50, %cst_25 [0] : vector<2x1x32xf32> to vector<1x32xf32>
    %52 = vector.shape_cast %51 : vector<1x32xf32> to vector<1x1x32xf32>
    %53 = arith.mulf %48, %48 : vector<2x8x32xf32>
    %cst_26 = arith.constant dense<0.000000e+00> : vector<2x32xf32>
    %54 = vector.multi_reduction <add>, %53, %cst_26 [1] : vector<2x8x32xf32> to vector<2x32xf32>
    %55 = vector.shape_cast %54 : vector<2x32xf32> to vector<2x1x32xf32>
    %cst_27 = arith.constant dense<0.000000e+00> : vector<1x32xf32>
    %56 = vector.multi_reduction <add>, %55, %cst_27 [0] : vector<2x1x32xf32> to vector<1x32xf32>
    %57 = vector.shape_cast %56 : vector<1x32xf32> to vector<1x1x32xf32>
    %cst_28 = arith.constant 6.250000e-02 : f32
    %58 = vector.broadcast %cst_28 : f32 to vector<1x1x32xf32>
    %59 = arith.mulf %52, %58 : vector<1x1x32xf32>
    %cst_29 = arith.constant 6.250000e-02 : f32
    %60 = vector.broadcast %cst_29 : f32 to vector<1x1x32xf32>
    %61 = arith.mulf %57, %60 : vector<1x1x32xf32>
    %62 = arith.mulf %59, %59 : vector<1x1x32xf32>
    %63 = arith.subf %61, %62 : vector<1x1x32xf32>
    %cst_30 = arith.constant 9.99999974E-6 : f32
    %64 = vector.broadcast %cst_30 : f32 to vector<1x1x32xf32>
    %65 = arith.addf %63, %64 : vector<1x1x32xf32>
    %66 = math.rsqrt %65 : vector<1x1x32xf32>
    %67 = vector.broadcast %59 : vector<1x1x32xf32> to vector<2x8x32xf32>
    %68 = arith.subf %48, %67 : vector<2x8x32xf32>
    %69 = vector.broadcast %66 : vector<1x1x32xf32> to vector<2x8x32xf32>
    %70 = arith.mulf %68, %69 : vector<2x8x32xf32>
    %cst_31 = arith.constant 0.000000e+00 : f32
    %71 = vector.broadcast %cst_31 : f32 to vector<2x8x32xf32>
    %72 = arith.maximumf %70, %71 : vector<2x8x32xf32>
    %c2 = arith.constant 2 : index
    %c0_32 = arith.constant 0 : index
    %c0_33 = arith.constant 0 : index
    %73 = vector.load %arg1[%c2, %c0_32, %c0_33] : memref<4x16x16xbf16, #tpu.memory_space<vmem>>, vector<1x4x8xbf16>
    %74 = vector.shape_cast %73 : vector<1x4x8xbf16> to vector<4x8xbf16>
    %75 = arith.truncf %72 : vector<2x8x32xf32> to vector<2x8x32xbf16>
    %c2_34 = arith.constant 2 : index
    %c0_35 = arith.constant 0 : index
    %c0_36 = arith.constant 0 : index
    %76 = vector.load %arg2[%c2_34, %c0_35, %c0_36] : memref<3x32x32xbf16, #tpu.memory_space<vmem>>, vector<1x32x32xbf16>
    %77 = vector.shape_cast %76 : vector<1x32x32xbf16> to vector<32x32xbf16>
    %78 = vector.shape_cast %77 : vector<32x32xbf16> to vector<1x32x32xbf16>
    %79 = vector.broadcast %78 : vector<1x32x32xbf16> to vector<2x32x32xbf16>
    "tpu.trace_start"() <{level = 10 : i32, message = "bjc,bcd->bjd"}> : () -> ()
    %cst_37 = arith.constant dense<0.000000e+00> : vector<2x8x32xf32>
    %80 = tpu.matmul %75, %79, %cst_37 {dimension_numbers = #tpu.dot_dimension_numbers<[2], [1], [1], [2], [0, 0, 0, 1, 1, 2], [0], [0]>} : vector<2x8x32xbf16>, vector<2x32x32xbf16>, vector<2x8x32xf32> -> vector<2x8x32xf32>
    "tpu.trace_stop"() : () -> ()
    %81 = vector.shape_cast %74 : vector<4x8xbf16> to vector<1x4x8xbf16>
    %82 = vector.broadcast %81 : vector<1x4x8xbf16> to vector<2x4x8xbf16>
    %83 = arith.truncf %80 : vector<2x8x32xf32> to vector<2x8x32xbf16>
    "tpu.trace_start"() <{level = 10 : i32, message = "bij,bjd->bid"}> : () -> ()
    %cst_38 = arith.constant dense<0.000000e+00> : vector<2x4x32xf32>
    %84 = tpu.matmul %82, %83, %cst_38 {dimension_numbers = #tpu.dot_dimension_numbers<[2], [1], [1], [2], [0, 0, 0, 1, 1, 2], [0], [0]>} : vector<2x4x8xbf16>, vector<2x8x32xbf16>, vector<2x4x32xf32> -> vector<2x4x32xf32>
    "tpu.trace_stop"() : () -> ()
    %cst_39 = arith.constant dense<0.000000e+00> : vector<2x32xf32>
    %85 = vector.multi_reduction <add>, %84, %cst_39 [1] : vector<2x4x32xf32> to vector<2x32xf32>
    %86 = vector.shape_cast %85 : vector<2x32xf32> to vector<2x1x32xf32>
    %cst_40 = arith.constant dense<0.000000e+00> : vector<1x32xf32>
    %87 = vector.multi_reduction <add>, %86, %cst_40 [0] : vector<2x1x32xf32> to vector<1x32xf32>
    %88 = vector.shape_cast %87 : vector<1x32xf32> to vector<1x1x32xf32>
    %89 = arith.mulf %84, %84 : vector<2x4x32xf32>
    %cst_41 = arith.constant dense<0.000000e+00> : vector<2x32xf32>
    %90 = vector.multi_reduction <add>, %89, %cst_41 [1] : vector<2x4x32xf32> to vector<2x32xf32>
    %91 = vector.shape_cast %90 : vector<2x32xf32> to vector<2x1x32xf32>
    %cst_42 = arith.constant dense<0.000000e+00> : vector<1x32xf32>
    %92 = vector.multi_reduction <add>, %91, %cst_42 [0] : vector<2x1x32xf32> to vector<1x32xf32>
    %93 = vector.shape_cast %92 : vector<1x32xf32> to vector<1x1x32xf32>
    %cst_43 = arith.constant 1.250000e-01 : f32
    %94 = vector.broadcast %cst_43 : f32 to vector<1x1x32xf32>
    %95 = arith.mulf %88, %94 : vector<1x1x32xf32>
    %cst_44 = arith.constant 1.250000e-01 : f32
    %96 = vector.broadcast %cst_44 : f32 to vector<1x1x32xf32>
    %97 = arith.mulf %93, %96 : vector<1x1x32xf32>
    %98 = arith.mulf %95, %95 : vector<1x1x32xf32>
    %99 = arith.subf %97, %98 : vector<1x1x32xf32>
    %cst_45 = arith.constant 9.99999974E-6 : f32
    %100 = vector.broadcast %cst_45 : f32 to vector<1x1x32xf32>
    %101 = arith.addf %99, %100 : vector<1x1x32xf32>
    %102 = math.rsqrt %101 : vector<1x1x32xf32>
    %103 = vector.broadcast %95 : vector<1x1x32xf32> to vector<2x4x32xf32>
    %104 = arith.subf %84, %103 : vector<2x4x32xf32>
    %105 = vector.broadcast %102 : vector<1x1x32xf32> to vector<2x4x32xf32>
    %106 = arith.mulf %104, %105 : vector<2x4x32xf32>
    %cst_46 = arith.constant 0.000000e+00 : f32
    %107 = vector.broadcast %cst_46 : f32 to vector<2x4x32xf32>
    %108 = arith.maximumf %106, %107 : vector<2x4x32xf32>
    %c3 = arith.constant 3 : index
    %c0_47 = arith.constant 0 : index
    %c0_48 = arith.constant 0 : index
    %109 = vector.load %arg1[%c3, %c0_47, %c0_48] : memref<4x16x16xbf16, #tpu.memory_space<vmem>>, vector<1x1x4xbf16>
    %110 = vector.shape_cast %109 : vector<1x1x4xbf16> to vector<1x4xbf16>
    %111 = vector.shape_cast %110 : vector<1x4xbf16> to vector<1x1x4xbf16>
    %112 = vector.broadcast %111 : vector<1x1x4xbf16> to vector<2x1x4xbf16>
    %113 = arith.truncf %108 : vector<2x4x32xf32> to vector<2x4x32xbf16>
    "tpu.trace_start"() <{level = 10 : i32, message = "bij,bjd->bid"}> : () -> ()
    %cst_49 = arith.constant dense<0.000000e+00> : vector<2x1x32xf32>
    %114 = tpu.matmul %112, %113, %cst_49 {dimension_numbers = #tpu.dot_dimension_numbers<[2], [1], [1], [2], [0, 0, 0, 1, 1, 2], [0], [0]>} : vector<2x1x4xbf16>, vector<2x4x32xbf16>, vector<2x1x32xf32> -> vector<2x1x32xf32>
    "tpu.trace_stop"() : () -> ()
    %c0_50 = arith.constant 0 : index
    %c0_51 = arith.constant 0 : index
    %115 = vector.load %arg3[%c0_50, %c0_51] : memref<33x128xbf16, #tpu.memory_space<vmem>>, vector<32x128xbf16>
    %c32 = arith.constant 32 : index
    %c0_52 = arith.constant 0 : index
    %116 = vector.load %arg3[%c32, %c0_52] : memref<33x128xbf16, #tpu.memory_space<vmem>>, vector<1x128xbf16>
    %117 = arith.extf %116 : vector<1x128xbf16> to vector<1x128xf32>
    %118 = arith.truncf %114 : vector<2x1x32xf32> to vector<2x1x32xbf16>
    %119 = vector.shape_cast %115 : vector<32x128xbf16> to vector<1x32x128xbf16>
    %120 = vector.broadcast %119 : vector<1x32x128xbf16> to vector<2x32x128xbf16>
    "tpu.trace_start"() <{level = 10 : i32, message = "bij,bjd->bid"}> : () -> ()
    %cst_53 = arith.constant dense<0.000000e+00> : vector<2x1x128xf32>
    %121 = tpu.matmul %118, %120, %cst_53 {dimension_numbers = #tpu.dot_dimension_numbers<[2], [1], [1], [2], [0, 0, 0, 1, 1, 2], [0], [0]>} : vector<2x1x32xbf16>, vector<2x32x128xbf16>, vector<2x1x128xf32> -> vector<2x1x128xf32>
    "tpu.trace_stop"() : () -> ()
    %122 = vector.shape_cast %117 : vector<1x128xf32> to vector<1x1x128xf32>
    %123 = vector.broadcast %122 : vector<1x1x128xf32> to vector<2x1x128xf32>
    %124 = arith.addf %121, %123 : vector<2x1x128xf32>
    %c0_54 = arith.constant 0 : index
    %c0_55 = arith.constant 0 : index
    %c0_56 = arith.constant 0 : index
    %125 = vector.load %arg4[%c0_54, %c0_55, %c0_56] : memref<2x1x128xf32, #tpu.memory_space<vmem>>, vector<2x1x128xf32>
    tpu.vector_store %arg4[%c0_54, %c0_55, %c0_56], %124 {strides = array<i32>} : memref<2x1x128xf32, #tpu.memory_space<vmem>>, vector<2x1x128xf32>,
    return
  }
}

</mosaic_0001>

<llo_original>
// kernel: tpu_custom_call.1
$region0: #{tpu_custom_call.1}
  #allocation0 [shape = 'u32[]', space=smem, size = 0x4, offset = 0x4, fixed_abs, tag = 'smem constant byte address 0x4 - core index']
  #allocation1 [shape = 'u32[144,128]{1,0:T(1,128)}', space=vmem, size = 0x12000, scoped, tag = 'internal scratch']
  %s0 = inlined_call_operand.hbm [shape: f32[2,16,32], index: 0, kind: input, shape index: {}]
  %s1 = inlined_call_operand.hbm [shape: bf16[4,16,16], index: 1, kind: input, shape index: {}]
  %s2 = inlined_call_operand.hbm [shape: bf16[3,32,32], index: 2, kind: input, shape index: {}]
  %s3 = inlined_call_operand.hbm [shape: bf16[33,128], index: 3, kind: input, shape index: {}]
  %s4 = inlined_call_operand.hbm [shape: f32[2,1,128], index: 4, kind: output, shape index: {}]
  %s5 = sld [smem:[#allocation0]]
  $region42: #{tpu_custom_call.1} parent=0
    _
  %s7 = ssub.s32 1, %s5
  %s8 = scalar_select 0, %s7, %s5
  $region1: #{tpu_custom_call.1} parent=0
    #allocation2 [shape = 'u8[16384]{0}', space=vmem, size = 0x4000, scoped, tag = 'input window, operand 0, single buffered']
    #allocation3 [shape = 's32[1]{0}', space=sflag, size = 0x4, scoped, tag = 'scoped memory for tpu_custom_call.1']
    #allocation4 [shape = 's32[1]{0}', space=sflag, size = 0x4, scoped, tag = 'scoped memory for tpu_custom_call.1']
    #allocation5 [shape = 'u8[16384]{0}', space=vmem, size = 0x4000, scoped, tag = 'input window, operand 1, single buffered']
    #allocation6 [shape = 's32[1]{0}', space=sflag, size = 0x4, scoped, tag = 'scoped memory for tpu_custom_call.1']
    #allocation7 [shape = 'u8[24576]{0}', space=vmem, size = 0x6000, scoped, tag = 'input window, operand 2, single buffered']
    #allocation8 [shape = 'u8[10240]{0}', space=vmem, size = 0x2800, scoped, tag = 'input window, operand 3, single buffered']
    #allocation9 [shape = 's32[1]{0}', space=sflag, size = 0x4, scoped, tag = 'scoped memory for tpu_custom_call.1']
    #allocation10 [shape = 'u8[1024]{0}', space=vmem, size = 0x400, scoped, tag = 'output window, operand 0, single buffered']
    %9 = vsyncpa [#allocation3], 0
    %10 = vsyncpa [#allocation6], 0
    %11 = vsyncpa [#allocation9], 0
    %12 = vsyncpa [#allocation4], 0
    // Predicated region
    $region2: #{tpu_custom_call.1} parent=1 // pred_check
      _
    $region3: #{tpu_custom_call.1} parent=1 // pred_check_branch
      %14 = sbr.rel (0) target = $region5
    $region4: #{tpu_custom_call.1} parent=1 // pred_region
      %s16 = ssub.s32 512, 512
      %17 = vsyncadd [#allocation3], %s16
      %s18 = sshll.u32 [#allocation2], 4
      %s19 = int_to_ptr.vmem [resolvable:$true] %s18
      %24 = dma.hbm_to_vmem [thread:$0]  %s0, 512, %s19, [#allocation3], 128, 128, 8
    $region5: #{tpu_custom_call.1} parent=1 // pred_fallthru
      _
    // Predicated region
    $region6: #{tpu_custom_call.1} parent=1 // pred_check
      _
    $region7: #{tpu_custom_call.1} parent=1 // pred_check_branch
      %26 = sbr.rel (0) target = $region9
    $region8: #{tpu_custom_call.1} parent=1 // pred_region
      %s28 = ssub.s32 512, 512
      %29 = vsyncadd [#allocation6], %s28
      %s30 = sshll.u32 [#allocation5], 4
      %s31 = int_to_ptr.vmem [resolvable:$true] %s30
      %36 = dma.hbm_to_vmem [thread:$0]  %s1, 512, %s31, [#allocation6], 64, 64, 4
    $region9: #{tpu_custom_call.1} parent=1 // pred_fallthru
      _
    // Predicated region
    $region10: #{tpu_custom_call.1} parent=1 // pred_check
      _
    $region11: #{tpu_custom_call.1} parent=1 // pred_check_branch
      %38 = sbr.rel (0) target = $region13
    $region12: #{tpu_custom_call.1} parent=1 // pred_region
      %s40 = ssub.s32 768, 768
      %41 = vsyncadd [#allocation6], %s40
      %s42 = sshll.u32 [#allocation7], 4
      %s43 = int_to_ptr.vmem [resolvable:$true] %s42
      %48 = dma.hbm_to_vmem [thread:$0]  %s2, 768, %s43, [#allocation6], 64, 64, 4
    $region13: #{tpu_custom_call.1} parent=1 // pred_fallthru
      _
    // Predicated region
    $region14: #{tpu_custom_call.1} parent=1 // pred_check
      _
    $region15: #{tpu_custom_call.1} parent=1 // pred_check_branch
      %50 = sbr.rel (0) target = $region17
    $region16: #{tpu_custom_call.1} parent=1 // pred_region
      %s52 = ssub.s32 320, 320
      %53 = vsyncadd [#allocation9], %s52
      %s54 = sshll.u32 [#allocation8], 4
      %s55 = int_to_ptr.vmem [resolvable:$true] %s54
      %60 = dma.hbm_to_vmem [thread:$0]  %s3, 320, %s55, [#allocation9], 64, 64, 4
    $region17: #{tpu_custom_call.1} parent=1 // pred_fallthru
      _
    // Predicated region
    $region18: #{tpu_custom_call.1} parent=1 // pred_check
      _
    $region19: #{tpu_custom_call.1} parent=1 // pred_check_branch
      %62 = sbr.rel (0) target = $region21
    $region20: #{tpu_custom_call.1} parent=1 // pred_region
      %63 = dma.done [#allocation3], 512
    $region21: #{tpu_custom_call.1} parent=1 // pred_fallthru
      _
    // Predicated region
    $region22: #{tpu_custom_call.1} parent=1 // pred_check
      _
    $region23: #{tpu_custom_call.1} parent=1 // pred_check_branch
      %65 = sbr.rel (0) target = $region25
    $region24: #{tpu_custom_call.1} parent=1 // pred_region
      %66 = dma.done [#allocation6], 512
    $region25: #{tpu_custom_call.1} parent=1 // pred_fallthru
      _
    // Predicated region
    $region26: #{tpu_custom_call.1} parent=1 // pred_check
      _
    $region27: #{tpu_custom_call.1} parent=1 // pred_check_branch
      %68 = sbr.rel (0) target = $region29
    $region28: #{tpu_custom_call.1} parent=1 // pred_region
      %69 = dma.done [#allocation6], 768
    $region29: #{tpu_custom_call.1} parent=1 // pred_fallthru
      _
    // Predicated region
    $region30: #{tpu_custom_call.1} parent=1 // pred_check
      _
    $region31: #{tpu_custom_call.1} parent=1 // pred_check_branch
      %71 = sbr.rel (0) target = $region33
    $region32: #{tpu_custom_call.1} parent=1 // pred_region
      %72 = dma.done [#allocation9], 320
    $region33: #{tpu_custom_call.1} parent=1 // pred_fallthru
      _
    %v74 = vld [vmem:[#allocation2] sm:$0xff]
    %v75 = vld [vmem:[#allocation2 + $0x8] sm:$0xff]
    %v76 = vld [vmem:[#allocation2 + $0x10] sm:$0xff]
    %v77 = vld [vmem:[#allocation2 + $0x18] sm:$0xff]
    %v78 = vld [vmem:[#allocation5] sm:$0xf]
    %v79 = vld [vmem:[#allocation5 + $0x4] sm:$0xf]
    %v80 = vpack.c.bf16 %v75, %v74
    %v81 = vpack.c.bf16 %v77, %v76
    %v82 = vld [vmem:[#allocation7] sm:$0xf]
    %v83 = vld [vmem:[#allocation7 + $0x4] sm:$0xf]
    %v84 = vld [vmem:[#allocation7 + $0x8] sm:$0xf]
    %v85 = vld [vmem:[#allocation7 + $0xc] sm:$0xf]
    %v90 = vunpack.c.l.b16 %v82
    %v91 = vunpack.c.l.b16 %v83
    %v92 = vunpack.c.l.b16 %v84
    %v93 = vunpack.c.l.b16 %v85
    %v94 = vpack.c.b16 %v91, %v90
    %v95 = vpack.c.b16 %v93, %v92
    %vm98 = vcmask 261120
    %v100 = vsel %vm98, %v80, 0
    %102 = vmatprep.subr.bf16.mxu0 0
    %103 = vmatpush1.bf16.msra.mxu0 %v94
    %104 = vmatprep.subr.bf16.mxu0 0
    %105 = vmatpush1.bf16.msra.mxu0 %v95
    %106 = vmatprep.subr.bf16.mxu0 0
    %107 = vmatpush1.bf16.msra.mxu0 0
    %108 = vmatprep.subr.bf16.mxu0 0
    %109 = vmatpush1.bf16.msra.mxu0 0
    %110 = vmatprep.subr.bf16.mxu0 0
    %111 = vmatpush1.bf16.msra.mxu0 0
    %112 = vmatprep.subr.bf16.mxu0 0
    %113 = vmatpush1.bf16.msra.mxu0 0
    %114 = vmatprep.subr.bf16.mxu0 0
    %115 = vmatpush1.bf16.msra.mxu0 0
    %116 = vmatprep.subr.bf16.mxu0 0
    %117 = vmatpush1.bf16.msra.mxu0 0
    %118 = vmatprep.subr.bf16.mxu0 0
    %119 = vmatpush1.bf16.msra.mxu0 0
    %120 = vmatprep.subr.bf16.mxu0 0
    %121 = vmatpush1.bf16.msra.mxu0 0
    %122 = vmatprep.subr.bf16.mxu0 0
    %123 = vmatpush1.bf16.msra.mxu0 0
    %124 = vmatprep.subr.bf16.mxu0 0
    %125 = vmatpush1.bf16.msra.mxu0 0
    %126 = vmatprep.subr.bf16.mxu0 0
    %127 = vmatpush1.bf16.msra.mxu0 0
    %128 = vmatprep.subr.bf16.mxu0 0
    %129 = vmatpush1.bf16.msra.mxu0 0
    %130 = vmatprep.subr.bf16.mxu0 0
    %131 = vmatpush1.bf16.msra.mxu0 0
    %132 = vmatprep.subr.bf16.mxu0 0
    %133 = vmatpush1.bf16.msra.mxu0 0
    %134 = vmatprep.mubr.bf16.mxu0 0
    %135 = vmatmul.mubr.bf16.gmra.mrb[0].mxu0 %v100
    %v136 = vpop.f32.mrb[0].mxu0
    %v137 = vadd.f32 0.0, %v136
    %v138 = vpop.f32.mrb[0].mxu0
    %v139 = vpop.f32.mrb[0].mxu0
    %v140 = vadd.f32 0.0, %v139
    %v141 = vpop.f32.mrb[0].mxu0
    %142 = vdwg.mxu0
    %v144 = vsel %vm98, %v81, 0
    %146 = vmatprep.subr.bf16.mxu0 0
    %147 = vmatpush1.bf16.msra.mxu0 %v94
    %148 = vmatprep.subr.bf16.mxu0 0
    %149 = vmatpush1.bf16.msra.mxu0 %v95
    %150 = vmatprep.subr.bf16.mxu0 0
    %151 = vmatpush1.bf16.msra.mxu0 0
    %152 = vmatprep.subr.bf16.mxu0 0
    %153 = vmatpush1.bf16.msra.mxu0 0
    %154 = vmatprep.subr.bf16.mxu0 0
    %155 = vmatpush1.bf16.msra.mxu0 0
    %156 = vmatprep.subr.bf16.mxu0 0
    %157 = vmatpush1.bf16.msra.mxu0 0
    %158 = vmatprep.subr.bf16.mxu0 0
    %159 = vmatpush1.bf16.msra.mxu0 0
    %160 = vmatprep.subr.bf16.mxu0 0
    %161 = vmatpush1.bf16.msra.mxu0 0
    %162 = vmatprep.subr.bf16.mxu0 0
    %163 = vmatpush1.bf16.msra.mxu0 0
    %164 = vmatprep.subr.bf16.mxu0 0
    %165 = vmatpush1.bf16.msra.mxu0 0
    %166 = vmatprep.subr.bf16.mxu0 0
    %167 = vmatpush1.bf16.msra.mxu0 0
    %168 = vmatprep.subr.bf16.mxu0 0
    %169 = vmatpush1.bf16.msra.mxu0 0
    %170 = vmatprep.subr.bf16.mxu0 0
    %171 = vmatpush1.bf16.msra.mxu0 0
    %172 = vmatprep.subr.bf16.mxu0 0
    %173 = vmatpush1.bf16.msra.mxu0 0
    %174 = vmatprep.subr.bf16.mxu0 0
    %175 = vmatpush1.bf16.msra.mxu0 0
    %176 = vmatprep.subr.bf16.mxu0 0
    %177 = vmatpush1.bf16.msra.mxu0 0
    %178 = vmatprep.mubr.bf16.mxu0 0
    %179 = vmatmul.mubr.bf16.gmra.mrb[0].mxu0 %v144
    %v180 = vpop.f32.mrb[0].mxu0
    %v181 = vadd.f32 0.0, %v180
    %v182 = vpop.f32.mrb[0].mxu0
    %v183 = vpop.f32.mrb[0].mxu0
    %v184 = vadd.f32 0.0, %v183
    %v185 = vpop.f32.mrb[0].mxu0
    %186 = vdwg.mxu0
    %v187 = vpack.c.bf16 %v140, %v137
    %v188 = vpack.c.bf16 %v184, %v181
    %v191 = vunpack.c.l.b16 %v78
    %v192 = vunpack.c.l.b16 %v79
    %v193 = vpack.c.b16 %v192, %v191
    %vm194 = vcmask 130048
    %v196 = vsel %vm194, %v193, 0
    %198 = vmatprep.subr.bf16.mxu0 0
    %199 = vmatpush1.bf16.msra.mxu0 %v187
    %200 = vmatprep.subr.bf16.mxu0 0
    %201 = vmatpush1.bf16.msra.mxu0 0
    %202 = vmatprep.subr.bf16.mxu0 0
    %203 = vmatpush1.bf16.msra.mxu0 0
    %204 = vmatprep.subr.bf16.mxu0 0
    %205 = vmatpush1.bf16.msra.mxu0 0
    %206 = vmatprep.subr.bf16.mxu0 0
    %207 = vmatpush1.bf16.msra.mxu0 0
    %208 = vmatprep.subr.bf16.mxu0 0
    %209 = vmatpush1.bf16.msra.mxu0 0
    %210 = vmatprep.subr.bf16.mxu0 0
    %211 = vmatpush1.bf16.msra.mxu0 0
    %212 = vmatprep.subr.bf16.mxu0 0
    %213 = vmatpush1.bf16.msra.mxu0 0
    %214 = vmatprep.subr.bf16.mxu0 0
    %215 = vmatpush1.bf16.msra.mxu0 0
    %216 = vmatprep.subr.bf16.mxu0 0
    %217 = vmatpush1.bf16.msra.mxu0 0
    %218 = vmatprep.subr.bf16.mxu0 0
    %219 = vmatpush1.bf16.msra.mxu0 0
    %220 = vmatprep.subr.bf16.mxu0 0
    %221 = vmatpush1.bf16.msra.mxu0 0
    %222 = vmatprep.subr.bf16.mxu0 0
    %223 = vmatpush1.bf16.msra.mxu0 0
    %224 = vmatprep.subr.bf16.mxu0 0
    %225 = vmatpush1.bf16.msra.mxu0 0
    %226 = vmatprep.subr.bf16.mxu0 0
    %227 = vmatpush1.bf16.msra.mxu0 0
    %228 = vmatprep.subr.bf16.mxu0 0
    %229 = vmatpush1.bf16.msra.mxu0 0
    %230 = vmatprep.mubr.bf16.mxu0 0
    %231 = vmatmul.mubr.bf16.gmra.mrb[0].mxu0 %v196
    %v232 = vpop.f32.mrb[0].mxu0
    %v233 = vadd.f32 0.0, %v232
    %v234 = vpop.f32.mrb[0].mxu0
    %v235 = vpop.f32.mrb[0].mxu0
    %v236 = vadd.f32 0.0, %v235
    %v237 = vpop.f32.mrb[0].mxu0
    %238 = vdwg.mxu0
    %239 = vmatprep.subr.bf16.mxu0 0
    %240 = vmatpush1.bf16.msra.mxu0 %v188
    %241 = vmatprep.subr.bf16.mxu0 0
    %242 = vmatpush1.bf16.msra.mxu0 0
    %243 = vmatprep.subr.bf16.mxu0 0
    %244 = vmatpush1.bf16.msra.mxu0 0
    %245 = vmatprep.subr.bf16.mxu0 0
    %246 = vmatpush1.bf16.msra.mxu0 0
    %247 = vmatprep.subr.bf16.mxu0 0
    %248 = vmatpush1.bf16.msra.mxu0 0
    %249 = vmatprep.subr.bf16.mxu0 0
    %250 = vmatpush1.bf16.msra.mxu0 0
    %251 = vmatprep.subr.bf16.mxu0 0
    %252 = vmatpush1.bf16.msra.mxu0 0
    %253 = vmatprep.subr.bf16.mxu0 0
    %254 = vmatpush1.bf16.msra.mxu0 0
    %255 = vmatprep.subr.bf16.mxu0 0
    %256 = vmatpush1.bf16.msra.mxu0 0
    %257 = vmatprep.subr.bf16.mxu0 0
    %258 = vmatpush1.bf16.msra.mxu0 0
    %259 = vmatprep.subr.bf16.mxu0 0
    %260 = vmatpush1.bf16.msra.mxu0 0
    %261 = vmatprep.subr.bf16.mxu0 0
    %262 = vmatpush1.bf16.msra.mxu0 0
    %263 = vmatprep.subr.bf16.mxu0 0
    %264 = vmatpush1.bf16.msra.mxu0 0
    %265 = vmatprep.subr.bf16.mxu0 0
    %266 = vmatpush1.bf16.msra.mxu0 0
    %267 = vmatprep.subr.bf16.mxu0 0
    %268 = vmatpush1.bf16.msra.mxu0 0
    %269 = vmatprep.subr.bf16.mxu0 0
    %270 = vmatpush1.bf16.msra.mxu0 0
    %271 = vmatprep.mubr.bf16.mxu0 0
    %272 = vmatmul.mubr.bf16.gmra.mrb[0].mxu0 %v196
    %v273 = vpop.f32.mrb[0].mxu0
    %v274 = vadd.f32 0.0, %v273
    %v275 = vpop.f32.mrb[0].mxu0
    %v276 = vpop.f32.mrb[0].mxu0
    %v277 = vadd.f32 0.0, %v276
    %v278 = vpop.f32.mrb[0].mxu0
    %279 = vdwg.mxu0
    %v280 = vsel %vm98, %v233, 0.0
    %v281 = vsel %vm98, %v236, 0.0
    %v282 = vadd.f32 %v280, %v281
    %v283 = vrot.slane %v282, 4
    %v284 = vadd.f32 %v282, %v283
    %v285 = vrot.slane %v284, 2
    %v286 = vadd.f32 %v284, %v285
    %v287 = vrot.slane %v286, 1
    %v288 = vadd.f32 %v286, %v287
    %v289 = vsel %vm98, %v274, 0.0
    %v290 = vsel %vm98, %v277, 0.0
    %v291 = vadd.f32 %v289, %v290
    %v292 = vrot.slane %v291, 4
    %v293 = vadd.f32 %v291, %v292
    %v294 = vrot.slane %v293, 2
    %v295 = vadd.f32 %v293, %v294
    %v296 = vrot.slane %v295, 1
    %v297 = vadd.f32 %v295, %v296
    %v298 = vsel %vm98, %v288, 0.0
    %v299 = vsel %vm98, %v297, 0.0
    %v300 = vadd.f32 %v298, %v299
    %v301 = vmul.f32 %v233, %v233
    %v302 = vmul.f32 %v236, %v236
    %v303 = vmul.f32 %v274, %v274
    %v304 = vmul.f32 %v277, %v277
    %v305 = vsel %vm98, %v301, 0.0
    %v306 = vsel %vm98, %v302, 0.0
    %v307 = vadd.f32 %v305, %v306
    %v308 = vrot.slane %v307, 4
    %v309 = vadd.f32 %v307, %v308
    %v310 = vrot.slane %v309, 2
    %v311 = vadd.f32 %v309, %v310
    %v312 = vrot.slane %v311, 1
    %v313 = vadd.f32 %v311, %v312
    %v314 = vsel %vm98, %v303, 0.0
    %v315 = vsel %vm98, %v304, 0.0
    %v316 = vadd.f32 %v314, %v315
    %v317 = vrot.slane %v316, 4
    %v318 = vadd.f32 %v316, %v317
    %v319 = vrot.slane %v318, 2
    %v320 = vadd.f32 %v318, %v319
    %v321 = vrot.slane %v320, 1
    %v322 = vadd.f32 %v320, %v321
    %v323 = vsel %vm98, %v313, 0.0
    %v324 = vsel %vm98, %v322, 0.0
    %v325 = vadd.f32 %v323, %v324
    %v326 = vmul.f32 %v300, 0.03125
    %v327 = vmul.f32 %v325, 0.03125
    %v328 = vmul.f32 %v326, %v326
    %v329 = vsub.f32 %v327, %v328
    %v330 = vadd.f32 %v329, 1e-05
    %v331 = vrsqrt.pop %v330
    %v332 = vsub.f32 %v233, %v326
    %v333 = vsub.f32 %v236, %v326
    %v334 = vsub.f32 %v274, %v326
    %v335 = vsub.f32 %v277, %v326
    %v336 = vmul.f32 %v332, %v331
    %v337 = vmul.f32 %v333, %v331
    %v338 = vmul.f32 %v334, %v331
    %v339 = vmul.f32 %v335, %v331
    %v340 = vmax.f32 %v336, 0.0
    %v341 = vmax.f32 %v337, 0.0
    %v342 = vmax.f32 %v338, 0.0
    %v343 = vmax.f32 %v339, 0.0
    %s344 = scalar_lea.vmem [#allocation5], 8
    %v345 = vld [vmem:[%s344] sm:$0xf]
    %v346 = vpack.c.bf16 %v341, %v340
    %v347 = vpack.c.bf16 %v343, %v342
    %s348 = scalar_lea.vmem [#allocation7], 16
    %v349 = vld [vmem:[%s348] sm:$0xf]
    %v350 = vld [vmem:[%s348 + $0x4] sm:$0xf]
    %v351 = vld [vmem:[%s348 + $0x8] sm:$0xf]
    %v352 = vld [vmem:[%s348 + $0xc] sm:$0xf]
    %v357 = vunpack.c.l.b16 %v349
    %v358 = vunpack.c.l.b16 %v350
    %v359 = vunpack.c.l.b16 %v351
    %v360 = vunpack.c.l.b16 %v352
    %v361 = vpack.c.b16 %v358, %v357
    %v362 = vpack.c.b16 %v360, %v359
    %v366 = vsel %vm98, %v346, 0
    %368 = vmatprep.subr.bf16.mxu0 0
    %369 = vmatpush1.bf16.msra.mxu0 %v361
    %370 = vmatprep.subr.bf16.mxu0 0
    %371 = vmatpush1.bf16.msra.mxu0 %v362
    %372 = vmatprep.subr.bf16.mxu0 0
    %373 = vmatpush1.bf16.msra.mxu0 0
    %374 = vmatprep.subr.bf16.mxu0 0
    %375 = vmatpush1.bf16.msra.mxu0 0
    %376 = vmatprep.subr.bf16.mxu0 0
    %377 = vmatpush1.bf16.msra.mxu0 0
    %378 = vmatprep.subr.bf16.mxu0 0
    %379 = vmatpush1.bf16.msra.mxu0 0
    %380 = vmatprep.subr.bf16.mxu0 0
    %381 = vmatpush1.bf16.msra.mxu0 0
    %382 = vmatprep.subr.bf16.mxu0 0
    %383 = vmatpush1.bf16.msra.mxu0 0
    %384 = vmatprep.subr.bf16.mxu0 0
    %385 = vmatpush1.bf16.msra.mxu0 0
    %386 = vmatprep.subr.bf16.mxu0 0
    %387 = vmatpush1.bf16.msra.mxu0 0
    %388 = vmatprep.subr.bf16.mxu0 0
    %389 = vmatpush1.bf16.msra.mxu0 0
    %390 = vmatprep.subr.bf16.mxu0 0
    %391 = vmatpush1.bf16.msra.mxu0 0
    %392 = vmatprep.subr.bf16.mxu0 0
    %393 = vmatpush1.bf16.msra.mxu0 0
    %394 = vmatprep.subr.bf16.mxu0 0
    %395 = vmatpush1.bf16.msra.mxu0 0
    %396 = vmatprep.subr.bf16.mxu0 0
    %397 = vmatpush1.bf16.msra.mxu0 0
    %398 = vmatprep.subr.bf16.mxu0 0
    %399 = vmatpush1.bf16.msra.mxu0 0
    %400 = vmatprep.mubr.bf16.mxu0 0
    %401 = vmatmul.mubr.bf16.gmra.mrb[0].mxu0 %v366
    %v402 = vpop.f32.mrb[0].mxu0
    %v403 = vadd.f32 0.0, %v402
    %v404 = vpop.f32.mrb[0].mxu0
    %v405 = vpop.f32.mrb[0].mxu0
    %v406 = vadd.f32 0.0, %v405
    %v407 = vpop.f32.mrb[0].mxu0
    %408 = vdwg.mxu0
    %v410 = vsel %vm98, %v347, 0
    %412 = vmatprep.subr.bf16.mxu0 0
    %413 = vmatpush1.bf16.msra.mxu0 %v361
    %414 = vmatprep.subr.bf16.mxu0 0
    %415 = vmatpush1.bf16.msra.mxu0 %v362
    %416 = vmatprep.subr.bf16.mxu0 0
    %417 = vmatpush1.bf16.msra.mxu0 0
    %418 = vmatprep.subr.bf16.mxu0 0
    %419 = vmatpush1.bf16.msra.mxu0 0
    %420 = vmatprep.subr.bf16.mxu0 0
    %421 = vmatpush1.bf16.msra.mxu0 0
    %422 = vmatprep.subr.bf16.mxu0 0
    %423 = vmatpush1.bf16.msra.mxu0 0
    %424 = vmatprep.subr.bf16.mxu0 0
    %425 = vmatpush1.bf16.msra.mxu0 0
    %426 = vmatprep.subr.bf16.mxu0 0
    %427 = vmatpush1.bf16.msra.mxu0 0
    %428 = vmatprep.subr.bf16.mxu0 0
    %429 = vmatpush1.bf16.msra.mxu0 0
    %430 = vmatprep.subr.bf16.mxu0 0
    %431 = vmatpush1.bf16.msra.mxu0 0
    %432 = vmatprep.subr.bf16.mxu0 0
    %433 = vmatpush1.bf16.msra.mxu0 0
    %434 = vmatprep.subr.bf16.mxu0 0
    %435 = vmatpush1.bf16.msra.mxu0 0
    %436 = vmatprep.subr.bf16.mxu0 0
    %437 = vmatpush1.bf16.msra.mxu0 0
    %438 = vmatprep.subr.bf16.mxu0 0
    %439 = vmatpush1.bf16.msra.mxu0 0
    %440 = vmatprep.subr.bf16.mxu0 0
    %441 = vmatpush1.bf16.msra.mxu0 0
    %442 = vmatprep.subr.bf16.mxu0 0
    %443 = vmatpush1.bf16.msra.mxu0 0
    %444 = vmatprep.mubr.bf16.mxu0 0
    %445 = vmatmul.mubr.bf16.gmra.mrb[0].mxu0 %v410
    %v446 = vpop.f32.mrb[0].mxu0
    %v447 = vadd.f32 0.0, %v446
    %v448 = vpop.f32.mrb[0].mxu0
    %v449 = vpop.f32.mrb[0].mxu0
    %v450 = vadd.f32 0.0, %v449
    %v451 = vpop.f32.mrb[0].mxu0
    %452 = vdwg.mxu0
    %v453 = vpack.c.bf16 %v406, %v403
    %v454 = vpack.c.bf16 %v450, %v447
    %v456 = vsel %vm194, %v345, 0
    %458 = vmatprep.subr.bf16.mxu0 0
    %459 = vmatpush1.bf16.msra.mxu0 %v453
    %460 = vmatprep.subr.bf16.mxu0 0
    %461 = vmatpush1.bf16.msra.mxu0 0
    %462 = vmatprep.subr.bf16.mxu0 0
    %463 = vmatpush1.bf16.msra.mxu0 0
    %464 = vmatprep.subr.bf16.mxu0 0
    %465 = vmatpush1.bf16.msra.mxu0 0
    %466 = vmatprep.subr.bf16.mxu0 0
    %467 = vmatpush1.bf16.msra.mxu0 0
    %468 = vmatprep.subr.bf16.mxu0 0
    %469 = vmatpush1.bf16.msra.mxu0 0
    %470 = vmatprep.subr.bf16.mxu0 0
    %471 = vmatpush1.bf16.msra.mxu0 0
    %472 = vmatprep.subr.bf16.mxu0 0
    %473 = vmatpush1.bf16.msra.mxu0 0
    %474 = vmatprep.subr.bf16.mxu0 0
    %475 = vmatpush1.bf16.msra.mxu0 0
    %476 = vmatprep.subr.bf16.mxu0 0
    %477 = vmatpush1.bf16.msra.mxu0 0
    %478 = vmatprep.subr.bf16.mxu0 0
    %479 = vmatpush1.bf16.msra.mxu0 0
    %480 = vmatprep.subr.bf16.mxu0 0
    %481 = vmatpush1.bf16.msra.mxu0 0
    %482 = vmatprep.subr.bf16.mxu0 0
    %483 = vmatpush1.bf16.msra.mxu0 0
    %484 = vmatprep.subr.bf16.mxu0 0
    %485 = vmatpush1.bf16.msra.mxu0 0
    %486 = vmatprep.subr.bf16.mxu0 0
    %487 = vmatpush1.bf16.msra.mxu0 0
    %488 = vmatprep.subr.bf16.mxu0 0
    %489 = vmatpush1.bf16.msra.mxu0 0
    %490 = vmatprep.mubr.bf16.mxu0 0
    %491 = vmatmul.mubr.bf16.gmra.mrb[0].mxu0 %v456
    %v492 = vpop.f32.mrb[0].mxu0
    %v493 = vadd.f32 0.0, %v492
    %v494 = vpop.f32.mrb[0].mxu0
    %v495 = vpop.f32.mrb[0].mxu0
    %v496 = vpop.f32.mrb[0].mxu0
    %497 = vdwg.mxu0
    %498 = vmatprep.subr.bf16.mxu0 0
    %499 = vmatpush1.bf16.msra.mxu0 %v454
    %500 = vmatprep.subr.bf16.mxu0 0
    %501 = vmatpush1.bf16.msra.mxu0 0
    %502 = vmatprep.subr.bf16.mxu0 0
    %503 = vmatpush1.bf16.msra.mxu0 0
    %504 = vmatprep.subr.bf16.mxu0 0
    %505 = vmatpush1.bf16.msra.mxu0 0
    %506 = vmatprep.subr.bf16.mxu0 0
    %507 = vmatpush1.bf16.msra.mxu0 0
    %508 = vmatprep.subr.bf16.mxu0 0
    %509 = vmatpush1.bf16.msra.mxu0 0
    %510 = vmatprep.subr.bf16.mxu0 0
    %511 = vmatpush1.bf16.msra.mxu0 0
    %512 = vmatprep.subr.bf16.mxu0 0
    %513 = vmatpush1.bf16.msra.mxu0 0
    %514 = vmatprep.subr.bf16.mxu0 0
    %515 = vmatpush1.bf16.msra.mxu0 0
    %516 = vmatprep.subr.bf16.mxu0 0
    %517 = vmatpush1.bf16.msra.mxu0 0
    %518 = vmatprep.subr.bf16.mxu0 0
    %519 = vmatpush1.bf16.msra.mxu0 0
    %520 = vmatprep.subr.bf16.mxu0 0
    %521 = vmatpush1.bf16.msra.mxu0 0
    %522 = vmatprep.subr.bf16.mxu0 0
    %523 = vmatpush1.bf16.msra.mxu0 0
    %524 = vmatprep.subr.bf16.mxu0 0
    %525 = vmatpush1.bf16.msra.mxu0 0
    %526 = vmatprep.subr.bf16.mxu0 0
    %527 = vmatpush1.bf16.msra.mxu0 0
    %528 = vmatprep.subr.bf16.mxu0 0
    %529 = vmatpush1.bf16.msra.mxu0 0
    %530 = vmatprep.mubr.bf16.mxu0 0
    %531 = vmatmul.mubr.bf16.gmra.mrb[0].mxu0 %v456
    %v532 = vpop.f32.mrb[0].mxu0
    %v533 = vadd.f32 0.0, %v532
    %v534 = vpop.f32.mrb[0].mxu0
    %v535 = vpop.f32.mrb[0].mxu0
    %v536 = vpop.f32.mrb[0].mxu0
    %537 = vdwg.mxu0
    %v538 = vsel %vm98, %v493, 0.0
    %v539 = vrot.slane %v538, 4
    %v540 = vadd.f32 %v538, %v539
    %v541 = vrot.slane %v540, 2
    %v542 = vadd.f32 %v540, %v541
    %v543 = vrot.slane %v542, 1
    %v544 = vadd.f32 %v542, %v543
    %v545 = vsel %vm98, %v533, 0.0
    %v546 = vrot.slane %v545, 4
    %v547 = vadd.f32 %v545, %v546
    %v548 = vrot.slane %v547, 2
    %v549 = vadd.f32 %v547, %v548
    %v550 = vrot.slane %v549, 1
    %v551 = vadd.f32 %v549, %v550
    %v552 = vsel %vm98, %v544, 0.0
    %v553 = vsel %vm98, %v551, 0.0
    %v554 = vadd.f32 %v552, %v553
    %v555 = vmul.f32 %v493, %v493
    %v556 = vmul.f32 %v533, %v533
    %v557 = vsel %vm98, %v555, 0.0
    %v558 = vrot.slane %v557, 4
    %v559 = vadd.f32 %v557, %v558
    %v560 = vrot.slane %v559, 2
    %v561 = vadd.f32 %v559, %v560
    %v562 = vrot.slane %v561, 1
    %v563 = vadd.f32 %v561, %v562
    %v564 = vsel %vm98, %v556, 0.0
    %v565 = vrot.slane %v564, 4
    %v566 = vadd.f32 %v564, %v565
    %v567 = vrot.slane %v566, 2
    %v568 = vadd.f32 %v566, %v567
    %v569 = vrot.slane %v568, 1
    %v570 = vadd.f32 %v568, %v569
    %v571 = vsel %vm98, %v563, 0.0
    %v572 = vsel %vm98, %v570, 0.0
    %v573 = vadd.f32 %v571, %v572
    %v574 = vmul.f32 %v554, 0.0625
    %v575 = vmul.f32 %v573, 0.0625
    %v576 = vmul.f32 %v574, %v574
    %v577 = vsub.f32 %v575, %v576
    %v578 = vadd.f32 %v577, 1e-05
    %v579 = vrsqrt.pop %v578
    %v580 = vsub.f32 %v493, %v574
    %v581 = vsub.f32 %v533, %v574
    %v582 = vmul.f32 %v580, %v579
    %v583 = vmul.f32 %v581, %v579
    %v584 = vmax.f32 %v582, 0.0
    %v585 = vmax.f32 %v583, 0.0
    %s586 = scalar_lea.vmem [#allocation5], 16
    %v587 = vld [vmem:[%s586] sm:$0x3]
    %v588 = vpack.c.bf16 %v584, %v584
    %v589 = vpack.c.bf16 %v585, %v585
    %s590 = scalar_lea.vmem [#allocation7], 32
    %v591 = vld [vmem:[%s590] sm:$0xf]
    %v592 = vld [vmem:[%s590 + $0x4] sm:$0xf]
    %v593 = vld [vmem:[%s590 + $0x8] sm:$0xf]
    %v594 = vld [vmem:[%s590 + $0xc] sm:$0xf]
    %v599 = vunpack.c.l.b16 %v591
    %v600 = vunpack.c.l.b16 %v592
    %v601 = vunpack.c.l.b16 %v593
    %v602 = vunpack.c.l.b16 %v594
    %v603 = vpack.c.b16 %v600, %v599
    %v604 = vpack.c.b16 %v602, %v601
    %v608 = vsel %vm98, %v588, 0
    %610 = vmatprep.subr.bf16.mxu0 0
    %611 = vmatpush1.bf16.msra.mxu0 %v603
    %612 = vmatprep.subr.bf16.mxu0 0
    %613 = vmatpush1.bf16.msra.mxu0 %v604
    %614 = vmatprep.subr.bf16.mxu0 0
    %615 = vmatpush1.bf16.msra.mxu0 0
    %616 = vmatprep.subr.bf16.mxu0 0
    %617 = vmatpush1.bf16.msra.mxu0 0
    %618 = vmatprep.subr.bf16.mxu0 0
    %619 = vmatpush1.bf16.msra.mxu0 0
    %620 = vmatprep.subr.bf16.mxu0 0
    %621 = vmatpush1.bf16.msra.mxu0 0
    %622 = vmatprep.subr.bf16.mxu0 0
    %623 = vmatpush1.bf16.msra.mxu0 0
    %624 = vmatprep.subr.bf16.mxu0 0
    %625 = vmatpush1.bf16.msra.mxu0 0
    %626 = vmatprep.subr.bf16.mxu0 0
    %627 = vmatpush1.bf16.msra.mxu0 0
    %628 = vmatprep.subr.bf16.mxu0 0
    %629 = vmatpush1.bf16.msra.mxu0 0
    %630 = vmatprep.subr.bf16.mxu0 0
    %631 = vmatpush1.bf16.msra.mxu0 0
    %632 = vmatprep.subr.bf16.mxu0 0
    %633 = vmatpush1.bf16.msra.mxu0 0
    %634 = vmatprep.subr.bf16.mxu0 0
    %635 = vmatpush1.bf16.msra.mxu0 0
    %636 = vmatprep.subr.bf16.mxu0 0
    %637 = vmatpush1.bf16.msra.mxu0 0
    %638 = vmatprep.subr.bf16.mxu0 0
    %639 = vmatpush1.bf16.msra.mxu0 0
    %640 = vmatprep.subr.bf16.mxu0 0
    %641 = vmatpush1.bf16.msra.mxu0 0
    %642 = vmatprep.mubr.bf16.mxu0 0
    %643 = vmatmul.mubr.bf16.gmra.mrb[0].mxu0 %v608
    %v644 = vpop.f32.mrb[0].mxu0
    %v645 = vadd.f32 0.0, %v644
    %v646 = vpop.f32.mrb[0].mxu0
    %v647 = vpop.f32.mrb[0].mxu0
    %v648 = vpop.f32.mrb[0].mxu0
    %649 = vdwg.mxu0
    %v651 = vsel %vm98, %v589, 0
    %653 = vmatprep.subr.bf16.mxu0 0
    %654 = vmatpush1.bf16.msra.mxu0 %v603
    %655 = vmatprep.subr.bf16.mxu0 0
    %656 = vmatpush1.bf16.msra.mxu0 %v604
    %657 = vmatprep.subr.bf16.mxu0 0
    %658 = vmatpush1.bf16.msra.mxu0 0
    %659 = vmatprep.subr.bf16.mxu0 0
    %660 = vmatpush1.bf16.msra.mxu0 0
    %661 = vmatprep.subr.bf16.mxu0 0
    %662 = vmatpush1.bf16.msra.mxu0 0
    %663 = vmatprep.subr.bf16.mxu0 0
    %664 = vmatpush1.bf16.msra.mxu0 0
    %665 = vmatprep.subr.bf16.mxu0 0
    %666 = vmatpush1.bf16.msra.mxu0 0
    %667 = vmatprep.subr.bf16.mxu0 0
    %668 = vmatpush1.bf16.msra.mxu0 0
    %669 = vmatprep.subr.bf16.mxu0 0
    %670 = vmatpush1.bf16.msra.mxu0 0
    %671 = vmatprep.subr.bf16.mxu0 0
    %672 = vmatpush1.bf16.msra.mxu0 0
    %673 = vmatprep.subr.bf16.mxu0 0
    %674 = vmatpush1.bf16.msra.mxu0 0
    %675 = vmatprep.subr.bf16.mxu0 0
    %676 = vmatpush1.bf16.msra.mxu0 0
    %677 = vmatprep.subr.bf16.mxu0 0
    %678 = vmatpush1.bf16.msra.mxu0 0
    %679 = vmatprep.subr.bf16.mxu0 0
    %680 = vmatpush1.bf16.msra.mxu0 0
    %681 = vmatprep.subr.bf16.mxu0 0
    %682 = vmatpush1.bf16.msra.mxu0 0
    %683 = vmatprep.subr.bf16.mxu0 0
    %684 = vmatpush1.bf16.msra.mxu0 0
    %685 = vmatprep.mubr.bf16.mxu0 0
    %686 = vmatmul.mubr.bf16.gmra.mrb[0].mxu0 %v651
    %v687 = vpop.f32.mrb[0].mxu0
    %v688 = vadd.f32 0.0, %v687
    %v689 = vpop.f32.mrb[0].mxu0
    %v690 = vpop.f32.mrb[0].mxu0
    %v691 = vpop.f32.mrb[0].mxu0
    %692 = vdwg.mxu0
    %v693 = vpack.c.bf16 %v645, %v645
    %v694 = vpack.c.bf16 %v688, %v688
    %vm695 = vcmask 64512
    %v697 = vsel %vm695, %v587, 0
    %vm699 = vcmask 1043456
    %v701 = vsel %vm699, %v693, 0
    %703 = vmatprep.subr.bf16.mxu0 0
    %704 = vmatpush1.bf16.msra.mxu0 %v701
    %705 = vmatprep.subr.bf16.mxu0 0
    %706 = vmatpush1.bf16.msra.mxu0 0
    %707 = vmatprep.subr.bf16.mxu0 0
    %708 = vmatpush1.bf16.msra.mxu0 0
    %709 = vmatprep.subr.bf16.mxu0 0
    %710 = vmatpush1.bf16.msra.mxu0 0
    %711 = vmatprep.subr.bf16.mxu0 0
    %712 = vmatpush1.bf16.msra.mxu0 0
    %713 = vmatprep.subr.bf16.mxu0 0
    %714 = vmatpush1.bf16.msra.mxu0 0
    %715 = vmatprep.subr.bf16.mxu0 0
    %716 = vmatpush1.bf16.msra.mxu0 0
    %717 = vmatprep.subr.bf16.mxu0 0
    %718 = vmatpush1.bf16.msra.mxu0 0
    %719 = vmatprep.subr.bf16.mxu0 0
    %720 = vmatpush1.bf16.msra.mxu0 0
    %721 = vmatprep.subr.bf16.mxu0 0
    %722 = vmatpush1.bf16.msra.mxu0 0
    %723 = vmatprep.subr.bf16.mxu0 0
    %724 = vmatpush1.bf16.msra.mxu0 0
    %725 = vmatprep.subr.bf16.mxu0 0
    %726 = vmatpush1.bf16.msra.mxu0 0
    %727 = vmatprep.subr.bf16.mxu0 0
    %728 = vmatpush1.bf16.msra.mxu0 0
    %729 = vmatprep.subr.bf16.mxu0 0
    %730 = vmatpush1.bf16.msra.mxu0 0
    %731 = vmatprep.subr.bf16.mxu0 0
    %732 = vmatpush1.bf16.msra.mxu0 0
    %733 = vmatprep.subr.bf16.mxu0 0
    %734 = vmatpush1.bf16.msra.mxu0 0
    %735 = vmatprep.mubr.bf16.mxu0 0
    %736 = vmatmul.mubr.bf16.gmra.mrb[0].mxu0 %v697
    %v737 = vpop.f32.mrb[0].mxu0
    %v738 = vadd.f32 0.0, %v737
    %v739 = vpop.f32.mrb[0].mxu0
    %v740 = vpop.f32.mrb[0].mxu0
    %v741 = vpop.f32.mrb[0].mxu0
    %742 = vdwg.mxu0
    %v744 = vsel %vm699, %v694, 0
    %746 = vmatprep.subr.bf16.mxu0 0
    %747 = vmatpush1.bf16.msra.mxu0 %v744
    %748 = vmatprep.subr.bf16.mxu0 0
    %749 = vmatpush1.bf16.msra.mxu0 0
    %750 = vmatprep.subr.bf16.mxu0 0
    %751 = vmatpush1.bf16.msra.mxu0 0
    %752 = vmatprep.subr.bf16.mxu0 0
    %753 = vmatpush1.bf16.msra.mxu0 0
    %754 = vmatprep.subr.bf16.mxu0 0
    %755 = vmatpush1.bf16.msra.mxu0 0
    %756 = vmatprep.subr.bf16.mxu0 0
    %757 = vmatpush1.bf16.msra.mxu0 0
    %758 = vmatprep.subr.bf16.mxu0 0
    %759 = vmatpush1.bf16.msra.mxu0 0
    %760 = vmatprep.subr.bf16.mxu0 0
    %761 = vmatpush1.bf16.msra.mxu0 0
    %762 = vmatprep.subr.bf16.mxu0 0
    %763 = vmatpush1.bf16.msra.mxu0 0
    %764 = vmatprep.subr.bf16.mxu0 0
    %765 = vmatpush1.bf16.msra.mxu0 0
    %766 = vmatprep.subr.bf16.mxu0 0
    %767 = vmatpush1.bf16.msra.mxu0 0
    %768 = vmatprep.subr.bf16.mxu0 0
    %769 = vmatpush1.bf16.msra.mxu0 0
    %770 = vmatprep.subr.bf16.mxu0 0
    %771 = vmatpush1.bf16.msra.mxu0 0
    %772 = vmatprep.subr.bf16.mxu0 0
    %773 = vmatpush1.bf16.msra.mxu0 0
    %774 = vmatprep.subr.bf16.mxu0 0
    %775 = vmatpush1.bf16.msra.mxu0 0
    %776 = vmatprep.subr.bf16.mxu0 0
    %777 = vmatpush1.bf16.msra.mxu0 0
    %778 = vmatprep.mubr.bf16.mxu0 0
    %779 = vmatmul.mubr.bf16.gmra.mrb[0].mxu0 %v697
    %v780 = vpop.f32.mrb[0].mxu0
    %v781 = vadd.f32 0.0, %v780
    %v782 = vpop.f32.mrb[0].mxu0
    %v783 = vpop.f32.mrb[0].mxu0
    %v784 = vpop.f32.mrb[0].mxu0
    %785 = vdwg.mxu0
    %vm786 = vcmask 257024
    %v787 = vsel %vm786, %v738, 0.0
    %v788 = vrot.slane %v787, 4
    %v789 = vadd.f32 %v787, %v788
    %v790 = vrot.slane %v789, 2
    %v791 = vadd.f32 %v789, %v790
    %v792 = vrot.slane %v791, 1
    %v793 = vadd.f32 %v791, %v792
    %v794 = vsel %vm786, %v781, 0.0
    %v795 = vrot.slane %v794, 4
    %v796 = vadd.f32 %v794, %v795
    %v797 = vrot.slane %v796, 2
    %v798 = vadd.f32 %v796, %v797
    %v799 = vrot.slane %v798, 1
    %v800 = vadd.f32 %v798, %v799
    %v801 = vsel %vm98, %v793, 0.0
    %v802 = vsel %vm98, %v800, 0.0
    %v803 = vadd.f32 %v801, %v802
    %v804 = vmul.f32 %v738, %v738
    %v805 = vmul.f32 %v781, %v781
    %v806 = vsel %vm786, %v804, 0.0
    %v807 = vrot.slane %v806, 4
    %v808 = vadd.f32 %v806, %v807
    %v809 = vrot.slane %v808, 2
    %v810 = vadd.f32 %v808, %v809
    %v811 = vrot.slane %v810, 1
    %v812 = vadd.f32 %v810, %v811
    %v813 = vsel %vm786, %v805, 0.0
    %v814 = vrot.slane %v813, 4
    %v815 = vadd.f32 %v813, %v814
    %v816 = vrot.slane %v815, 2
    %v817 = vadd.f32 %v815, %v816
    %v818 = vrot.slane %v817, 1
    %v819 = vadd.f32 %v817, %v818
    %v820 = vsel %vm98, %v812, 0.0
    %v821 = vsel %vm98, %v819, 0.0
    %v822 = vadd.f32 %v820, %v821
    %v823 = vmul.f32 %v803, 0.125
    %v824 = vmul.f32 %v822, 0.125
    %v825 = vmul.f32 %v823, %v823
    %v826 = vsub.f32 %v824, %v825
    %v827 = vadd.f32 %v826, 1e-05
    %v828 = vrsqrt.pop %v827
    %v829 = vsub.f32 %v738, %v823
    %v830 = vsub.f32 %v781, %v823
    %v831 = vmul.f32 %v829, %v828
    %v832 = vmul.f32 %v830, %v828
    %v833 = vmax.f32 %v831, 0.0
    %v834 = vmax.f32 %v832, 0.0
    %s835 = scalar_lea.vmem [#allocation5], 24
    %v836 = vld [vmem:[%s835] sm:$0x1]
    %v837 = vpack.c.bf16 %v833, %v833
    %v838 = vpack.c.bf16 %v834, %v834
    %vm839 = vcmask 31744
    %v841 = vsel %vm839, %v836, 0
    %vm843 = vcmask 1041408
    %v845 = vsel %vm843, %v837, 0
    %847 = vmatprep.subr.bf16.mxu0 0
    %848 = vmatpush1.bf16.msra.mxu0 %v845
    %849 = vmatprep.subr.bf16.mxu0 0
    %850 = vmatpush1.bf16.msra.mxu0 0
    %851 = vmatprep.subr.bf16.mxu0 0
    %852 = vmatpush1.bf16.msra.mxu0 0
    %853 = vmatprep.subr.bf16.mxu0 0
    %854 = vmatpush1.bf16.msra.mxu0 0
    %855 = vmatprep.subr.bf16.mxu0 0
    %856 = vmatpush1.bf16.msra.mxu0 0
    %857 = vmatprep.subr.bf16.mxu0 0
    %858 = vmatpush1.bf16.msra.mxu0 0
    %859 = vmatprep.subr.bf16.mxu0 0
    %860 = vmatpush1.bf16.msra.mxu0 0
    %861 = vmatprep.subr.bf16.mxu0 0
    %862 = vmatpush1.bf16.msra.mxu0 0
    %863 = vmatprep.subr.bf16.mxu0 0
    %864 = vmatpush1.bf16.msra.mxu0 0
    %865 = vmatprep.subr.bf16.mxu0 0
    %866 = vmatpush1.bf16.msra.mxu0 0
    %867 = vmatprep.subr.bf16.mxu0 0
    %868 = vmatpush1.bf16.msra.mxu0 0
    %869 = vmatprep.subr.bf16.mxu0 0
    %870 = vmatpush1.bf16.msra.mxu0 0
    %871 = vmatprep.subr.bf16.mxu0 0
    %872 = vmatpush1.bf16.msra.mxu0 0
    %873 = vmatprep.subr.bf16.mxu0 0
    %874 = vmatpush1.bf16.msra.mxu0 0
    %875 = vmatprep.subr.bf16.mxu0 0
    %876 = vmatpush1.bf16.msra.mxu0 0
    %877 = vmatprep.subr.bf16.mxu0 0
    %878 = vmatpush1.bf16.msra.mxu0 0
    %879 = vmatprep.mubr.bf16.mxu0 0
    %880 = vmatmul.mubr.bf16.gmra.mrb[0].mxu0 %v841
    %v881 = vpop.f32.mrb[0].mxu0
    %v882 = vadd.f32 0.0, %v881
    %v883 = vpop.f32.mrb[0].mxu0
    %v884 = vpop.f32.mrb[0].mxu0
    %v885 = vpop.f32.mrb[0].mxu0
    %886 = vdwg.mxu0
    %v888 = vsel %vm843, %v838, 0
    %890 = vmatprep.subr.bf16.mxu0 0
    %891 = vmatpush1.bf16.msra.mxu0 %v888
    %892 = vmatprep.subr.bf16.mxu0 0
    %893 = vmatpush1.bf16.msra.mxu0 0
    %894 = vmatprep.subr.bf16.mxu0 0
    %895 = vmatpush1.bf16.msra.mxu0 0
    %896 = vmatprep.subr.bf16.mxu0 0
    %897 = vmatpush1.bf16.msra.mxu0 0
    %898 = vmatprep.subr.bf16.mxu0 0
    %899 = vmatpush1.bf16.msra.mxu0 0
    %900 = vmatprep.subr.bf16.mxu0 0
    %901 = vmatpush1.bf16.msra.mxu0 0
    %902 = vmatprep.subr.bf16.mxu0 0
    %903 = vmatpush1.bf16.msra.mxu0 0
    %904 = vmatprep.subr.bf16.mxu0 0
    %905 = vmatpush1.bf16.msra.mxu0 0
    %906 = vmatprep.subr.bf16.mxu0 0
    %907 = vmatpush1.bf16.msra.mxu0 0
    %908 = vmatprep.subr.bf16.mxu0 0
    %909 = vmatpush1.bf16.msra.mxu0 0
    %910 = vmatprep.subr.bf16.mxu0 0
    %911 = vmatpush1.bf16.msra.mxu0 0
    %912 = vmatprep.subr.bf16.mxu0 0
    %913 = vmatpush1.bf16.msra.mxu0 0
    %914 = vmatprep.subr.bf16.mxu0 0
    %915 = vmatpush1.bf16.msra.mxu0 0
    %916 = vmatprep.subr.bf16.mxu0 0
    %917 = vmatpush1.bf16.msra.mxu0 0
    %918 = vmatprep.subr.bf16.mxu0 0
    %919 = vmatpush1.bf16.msra.mxu0 0
    %920 = vmatprep.subr.bf16.mxu0 0
    %921 = vmatpush1.bf16.msra.mxu0 0
    %922 = vmatprep.mubr.bf16.mxu0 0
    %923 = vmatmul.mubr.bf16.gmra.mrb[0].mxu0 %v841
    %v924 = vpop.f32.mrb[0].mxu0
    %v925 = vadd.f32 0.0, %v924
    %v926 = vpop.f32.mrb[0].mxu0
    %v927 = vpop.f32.mrb[0].mxu0
    %v928 = vpop.f32.mrb[0].mxu0
    %929 = vdwg.mxu0
    %v930 = vld [vmem:[#allocation8] sm:$0xf]
    %v931 = vld [vmem:[#allocation8 + $0x4] sm:$0xf]
    %v932 = vld [vmem:[#allocation8 + $0x8] sm:$0xf]
    %v933 = vld [vmem:[#allocation8 + $0xc] sm:$0xf]
    %v934 = vld [vmem:[#allocation8 + $0x10] sm:$0x1]
    %v935 = vunpack.c.l.bf16 %v934
    %v936 = vpack.c.bf16 %v882, %v882
    %v937 = vpack.c.bf16 %v925, %v925
    %v942 = vunpack.c.l.b16 %v930
    %v943 = vunpack.c.l.b16 %v931
    %v944 = vunpack.c.l.b16 %v932
    %v945 = vunpack.c.l.b16 %v933
    %v946 = vpack.c.b16 %v943, %v942
    %v947 = vpack.c.b16 %v945, %v944
    %v951 = vsel %vm98, %v936, 0
    %953 = vmatprep.subr.bf16.mxu0 0
    %954 = vmatpush1.bf16.msra.mxu0 %v946
    %955 = vmatprep.subr.bf16.mxu0 0
    %956 = vmatpush1.bf16.msra.mxu0 %v947
    %957 = vmatprep.subr.bf16.mxu0 0
    %958 = vmatpush1.bf16.msra.mxu0 0
    %959 = vmatprep.subr.bf16.mxu0 0
    %960 = vmatpush1.bf16.msra.mxu0 0
    %961 = vmatprep.subr.bf16.mxu0 0
    %962 = vmatpush1.bf16.msra.mxu0 0
    %963 = vmatprep.subr.bf16.mxu0 0
    %964 = vmatpush1.bf16.msra.mxu0 0
    %965 = vmatprep.subr.bf16.mxu0 0
    %966 = vmatpush1.bf16.msra.mxu0 0
    %967 = vmatprep.subr.bf16.mxu0 0
    %968 = vmatpush1.bf16.msra.mxu0 0
    %969 = vmatprep.subr.bf16.mxu0 0
    %970 = vmatpush1.bf16.msra.mxu0 0
    %971 = vmatprep.subr.bf16.mxu0 0
    %972 = vmatpush1.bf16.msra.mxu0 0
    %973 = vmatprep.subr.bf16.mxu0 0
    %974 = vmatpush1.bf16.msra.mxu0 0
    %975 = vmatprep.subr.bf16.mxu0 0
    %976 = vmatpush1.bf16.msra.mxu0 0
    %977 = vmatprep.subr.bf16.mxu0 0
    %978 = vmatpush1.bf16.msra.mxu0 0
    %979 = vmatprep.subr.bf16.mxu0 0
    %980 = vmatpush1.bf16.msra.mxu0 0
    %981 = vmatprep.subr.bf16.mxu0 0
    %982 = vmatpush1.bf16.msra.mxu0 0
    %983 = vmatprep.subr.bf16.mxu0 0
    %984 = vmatpush1.bf16.msra.mxu0 0
    %985 = vmatprep.mubr.bf16.mxu0 0
    %986 = vmatmul.mubr.bf16.gmra.mrb[0].mxu0 %v951
    %v987 = vpop.f32.mrb[0].mxu0
    %v988 = vadd.f32 %v935, %v987
    %v989 = vpop.f32.mrb[0].mxu0
    %v990 = vpop.f32.mrb[0].mxu0
    %v991 = vpop.f32.mrb[0].mxu0
    %992 = vdwg.mxu0
    %v994 = vsel %vm98, %v937, 0
    %996 = vmatprep.subr.bf16.mxu0 0
    %997 = vmatpush1.bf16.msra.mxu0 %v946
    %998 = vmatprep.subr.bf16.mxu0 0
    %999 = vmatpush1.bf16.msra.mxu0 %v947
    %1000 = vmatprep.subr.bf16.mxu0 0
    %1001 = vmatpush1.bf16.msra.mxu0 0
    %1002 = vmatprep.subr.bf16.mxu0 0
    %1003 = vmatpush1.bf16.msra.mxu0 0
    %1004 = vmatprep.subr.bf16.mxu0 0
    %1005 = vmatpush1.bf16.msra.mxu0 0
    %1006 = vmatprep.subr.bf16.mxu0 0
    %1007 = vmatpush1.bf16.msra.mxu0 0
    %1008 = vmatprep.subr.bf16.mxu0 0
    %1009 = vmatpush1.bf16.msra.mxu0 0
    %1010 = vmatprep.subr.bf16.mxu0 0
    %1011 = vmatpush1.bf16.msra.mxu0 0
    %1012 = vmatprep.subr.bf16.mxu0 0
    %1013 = vmatpush1.bf16.msra.mxu0 0
    %1014 = vmatprep.subr.bf16.mxu0 0
    %1015 = vmatpush1.bf16.msra.mxu0 0
    %1016 = vmatprep.subr.bf16.mxu0 0
    %1017 = vmatpush1.bf16.msra.mxu0 0
    %1018 = vmatprep.subr.bf16.mxu0 0
    %1019 = vmatpush1.bf16.msra.mxu0 0
    %1020 = vmatprep.subr.bf16.mxu0 0
    %1021 = vmatpush1.bf16.msra.mxu0 0
    %1022 = vmatprep.subr.bf16.mxu0 0
    %1023 = vmatpush1.bf16.msra.mxu0 0
    %1024 = vmatprep.subr.bf16.mxu0 0
    %1025 = vmatpush1.bf16.msra.mxu0 0
    %1026 = vmatprep.subr.bf16.mxu0 0
    %1027 = vmatpush1.bf16.msra.mxu0 0
    %1028 = vmatprep.mubr.bf16.mxu0 0
    %1029 = vmatmul.mubr.bf16.gmra.mrb[0].mxu0 %v994
    %v1030 = vpop.f32.mrb[0].mxu0
    %v1031 = vadd.f32 %v935, %v1030
    %v1032 = vpop.f32.mrb[0].mxu0
    %v1033 = vpop.f32.mrb[0].mxu0
    %v1034 = vpop.f32.mrb[0].mxu0
    %1035 = vdwg.mxu0
    %1036 = vst [vmem:[#allocation10] sm:$0x1] %v988
    %1037 = vst [vmem:[#allocation10 + $0x1] sm:$0x1] %v1031
    // Predicated region
    $region34: #{tpu_custom_call.1} parent=1 // pred_check
      _
    $region35: #{tpu_custom_call.1} parent=1 // pred_check_branch
      %1039 = sbr.rel (0) target = $region37
    $region36: #{tpu_custom_call.1} parent=1 // pred_region
      %s1041 = ssub.s32 32, 32
      %1042 = vsyncadd [#allocation4], %s1041
      %s1043 = sshll.u32 [#allocation10], 4
      %s1044 = int_to_ptr.vmem [resolvable:$true] %s1043
      %1049 = dma.vmem_to_hbm [thread:$0]  %s1044, 32, %s4, [#allocation4], 16, 16, 1
    $region37: #{tpu_custom_call.1} parent=1 // pred_fallthru
      _
    // Predicated region
    $region38: #{tpu_custom_call.1} parent=1 // pred_check
      _
    $region39: #{tpu_custom_call.1} parent=1 // pred_check_branch
      %1051 = sbr.rel (0) target = $region41
    $region40: #{tpu_custom_call.1} parent=1 // pred_region
      %1052 = dma.done [#allocation4], 32
    $region41: #{tpu_custom_call.1} parent=1 // pred_fallthru
      _
    %1053 = vsyncpa [#allocation3], 1
    %1054 = vsyncpa [#allocation6], 1
    %1055 = vsyncpa [#allocation9], 1
    %1056 = vsyncpa [#allocation4], 1

</llo_original>
